<compile_context>
chip_gen: v5e
topology: v5e:2x2
jax: 0.10.0
libtpu: 0.0.40
codegen_flags: <defaults>
</compile_context>

<pallas_src>
import jax
import jax.numpy as jnp
from jax import lax
from jax.experimental import pallas as pl
from jax.experimental.pallas import tpu as pltpu


SEG_VOCAB_PADDED = 8  # segment vocab is 3 (pad / sent_A / sent_B); pad to 8 sublanes


def _bert_embedding_kernel(tok_ids_smem,   # (Np,)  int32, SMEM (scalar prefetch)
                           seg_ids_ref,    # (T, 1) int32, VMEM
                           pe_ref,         # (T, E) f32,   VMEM
                           seg_tab_ref,    # (8, E) f32,   VMEM
                           tok_tab_hbm,    # (V, E) f32,   HBM (pl.ANY, no auto-DMA)
                           out_ref,        # (T, E) f32,   VMEM
                           gather_buf,     # (T, E) f32,   VMEM scratch
                           gather_sem):    # DMA semaphore (scalar)
    T, _E = out_ref.shape
    base = pl.program_id(0) * T

    # --- 1) Issue one row DMA per token of this tile (all concurrently in flight).
    def _start(t, carry):
        row = tok_ids_smem[base + t]
        pltpu.make_async_copy(
            tok_tab_hbm.at[pl.ds(row, 1)],      # (1, E) row in HBM
            gather_buf.at[pl.ds(t, 1)],         # (1, E) destination row in VMEM
            gather_sem,
        ).start()
        return carry

    lax.fori_loop(0, T, _start, 0)

    # --- 2) Wait for all T row copies.  Per-row waits keep the semaphore
    #        signal/wait amounts exactly balanced and cover every dest row.
    def _wait(t, carry):
        pltpu.make_async_copy(
            tok_tab_hbm.at[pl.ds(0, 1)],
            gather_buf.at[pl.ds(t, 1)],
            gather_sem,
        ).wait()
        return carry

    lax.fori_loop(0, T, _wait, 0)

    # --- 3) Segment embedding via a 3-way VPU select (no MXU push/pop).
    seg_ids = seg_ids_ref[...]                  # (T, 1) int32
    s0 = seg_tab_ref[0:1, :]                    # (1, E)  padding / single-sentence
    s1 = seg_tab_ref[1:2, :]                    # (1, E)  sent_A
    s2 = seg_tab_ref[2:3, :]                    # (1, E)  sent_B
    seg_emb = jnp.where(seg_ids == 1, s1, jnp.where(seg_ids == 2, s2, s0))  # (T, E)

    # --- 4) token + segment + positional; single lane-dense (T, E) store.
    out_ref[...] = gather_buf[...] + seg_emb + pe_ref[...]


def bert_embedding(sequence, segment_label, tok_table, seg_table_padded, pe,
                   *, tile_tokens=128):
    """sequence, segment_label: (B, S) int32; returns (B, S, E) float32.

    NOTE: out-of-range token ids are NOT checked here (PyTorch nn.Embedding
    would raise); callers must pass ids in [0, vocab_size).
    """
    B, S = sequence.shape
    V, E = tok_table.shape
    N = B * S
    T = tile_tokens
    n_tiles = pl.cdiv(N, T)
    Np = n_tiles * T

    tok_ids = sequence.reshape(N).astype(jnp.int32)
    seg_ids = segment_label.reshape(N).astype(jnp.int32)
    pe_flat = jnp.tile(pe, (B, 1)).astype(jnp.float32)         # (N, E)

    if Np != N:  # pad the flat token axis up to a whole number of tiles
        pad = Np - N
        tok_ids = jnp.concatenate([tok_ids, jnp.zeros((pad,), jnp.int32)])
        seg_ids = jnp.concatenate([seg_ids, jnp.zeros((pad,), jnp.int32)])
        pe_flat = jnp.concatenate([pe_flat, jnp.zeros((pad, E), jnp.float32)], axis=0)

    seg_ids_col = seg_ids.reshape(Np, 1)

    grid_spec = pltpu.PrefetchScalarGridSpec(
        num_scalar_prefetch=1,                                  # token ids -> SMEM
        grid=(n_tiles,),
        in_specs=[
            pl.BlockSpec((T, 1), lambda i, ids: (i, 0)),        # segment ids tile
            pl.BlockSpec((T, E), lambda i, ids: (i, 0)),        # positional tile
            pl.BlockSpec((SEG_VOCAB_PADDED, E), lambda i, ids: (0, 0)),  # seg table (tiny, VMEM)
            pl.BlockSpec(memory_space=pl.ANY),                  # token table stays in HBM
        ],
        out_specs=pl.BlockSpec((T, E), lambda i, ids: (i, 0)),  # lane-dense 2-D output
        scratch_shapes=[
            pltpu.VMEM((T, E), jnp.float32),                    # gather destination
            pltpu.SemaphoreType.DMA(()),
        ],
    )

    out_flat = pl.pallas_call(
        _bert_embedding_kernel,
        out_shape=jax.ShapeDtypeStruct((Np, E), jnp.float32),
        grid_spec=grid_spec,
        compiler_params=pltpu.CompilerParams(
            dimension_semantics=("parallel",)),                 # megacore-shardable on v7x
    )(tok_ids, seg_ids_col, pe_flat, seg_table_padded, tok_table)

    return out_flat[:N].reshape(B, S, E)


def make_sinusoidal_pe(seq_len, d_model):
    """PositionalEmbedding from the bert-pytorch repo (fixed sin/cos buffer)."""
    position = jnp.arange(seq_len, dtype=jnp.float32)[:, None]          # (S, 1)
    div_term = jnp.exp(
        jnp.arange(0, d_model, 2, dtype=jnp.float32)
        * (-jnp.log(10000.0) / d_model))                                 # (E/2,)
    pe = jnp.zeros((seq_len, d_model), dtype=jnp.float32)
    pe = pe.at[:, 0::2].set(jnp.sin(position * div_term))
    pe = pe.at[:, 1::2].set(jnp.cos(position * div_term))
    return pe


def init_params(key, vocab_size, embed_size):
    k_tok, k_seg = jax.random.split(key)
    # nn.Embedding default init ~ N(0,1); padding_idx=0 zeros row 0.
    tok_table = jax.random.normal(k_tok, (vocab_size, embed_size), jnp.float32)
    tok_table = tok_table.at[0].set(0.0)
    seg_table = jax.random.normal(k_seg, (3, embed_size), jnp.float32)
    seg_table = seg_table.at[0].set(0.0)
    # Pad segment vocab (3 -> 8 sublanes); ids never exceed 2 so pad rows unused.
    seg_table_padded = jnp.zeros((SEG_VOCAB_PADDED, embed_size), jnp.float32)
    seg_table_padded = seg_table_padded.at[:3].set(seg_table)
    return tok_table, seg_table, seg_table_padded


def reference(sequence, segment_label, tok_table, seg_table, pe):
    tok = tok_table[sequence]                       # (B, S, E)
    seg = seg_table[segment_label]                  # (B, S, E)
    return tok + seg + pe[None, :, :]


if __name__ == "__main__":
    VOCAB = 64
    EMBED = 128          # keep the embedding dim a multiple of 128 (lane-dense)
    B, S = 2, 8

    key = jax.random.PRNGKey(0)
    k_params, k_seq, k_seg = jax.random.split(key, 3)

    tok_table, seg_table, seg_table_padded = init_params(k_params, VOCAB, EMBED)
    pe = make_sinusoidal_pe(S, EMBED)

    sequence = jax.random.randint(k_seq, (B, S), 0, VOCAB, dtype=jnp.int32)
    segment_label = jax.random.randint(k_seg, (B, S), 0, 3, dtype=jnp.int32)

    out = bert_embedding(sequence, segment_label, tok_table, seg_table_padded, pe)
    out = jax.block_until_ready(out)

    ref = reference(sequence, segment_label, tok_table, seg_table, pe)
    assert out.shape == (B, S, EMBED)
    assert jnp.allclose(out, ref, atol=1e-5, rtol=1e-5), "mismatch vs reference"

    print("KERNEL_OK")
</pallas_src>

<mosaic_0001>
module attributes {stable_mosaic.version = 11 : i64} {
  func.func @_bert_embedding_kernel(%arg0: i32, %arg1: memref<128xi32, #tpu.memory_space<smem>>, %arg2: memref<128x1xi32, #tpu.memory_space<vmem>>, %arg3: memref<128x128xf32, #tpu.memory_space<vmem>>, %arg4: memref<8x128xf32, #tpu.memory_space<vmem>>, %arg5: memref<64x128xf32, #tpu.memory_space<any>>, %arg6: memref<128x128xf32, #tpu.memory_space<vmem>>, %arg7: memref<128x128xf32, #tpu.memory_space<vmem>>, %arg8: memref<!tpu.dma_semaphore, #tpu.memory_space<semaphore_mem>>) attributes {dimension_semantics = [#tpu.dimension_semantics<parallel>], iteration_bounds = array<i64: 1>, scalar_prefetch = 1 : i64, scratch_operands = 2 : i64, tpu.core_type = #tpu.core_type<tc>, window_params = [{transform_indices = @transform_0, window_bounds = array<i64: 128, 1>}, {transform_indices = @transform_1, window_bounds = array<i64: 128, 128>}, {pipeline_mode = #tpu.pipeline_mode<synchronous>, transform_indices = @transform_2, window_bounds = array<i64: 8, 128>}, {}, {transform_indices = @transform_4, window_bounds = array<i64: 128, 128>}]} {
    %c128_i32 = arith.constant 128 : i32
    %0 = arith.muli %arg0, %c128_i32 : i32
    %c0_i32 = arith.constant 0 : i32
    %c128_i32_0 = arith.constant 128 : i32
    %1 = arith.addi %c0_i32, %c128_i32_0 : i32
    %c1_i32 = arith.constant 1 : i32
    scf.for %arg9 = %c0_i32 to %1 step %c1_i32  : i32 {
      %28 = arith.addi %0, %arg9 : i32
      %29 = arith.index_cast %28 : i32 to index
      %30 = memref.load %arg1[%29] : memref<128xi32, #tpu.memory_space<smem>>
      %c0_i32_18 = arith.constant 0 : i32
      %31 = tpu.memref_slice %arg5[%30, %c0_i32_18] : memref<64x128xf32, #tpu.memory_space<any>> -> memref<1x128xf32, #tpu.memory_space<any>>
      %c0_i32_19 = arith.constant 0 : i32
      %32 = tpu.memref_slice %arg7[%arg9, %c0_i32_19] : memref<128x128xf32, #tpu.memory_space<vmem>> -> memref<1x128xf32, #tpu.memory_space<vmem>>
      tpu.enqueue_dma source(%31 : memref<1x128xf32, #tpu.memory_space<any>>) target(%32 : memref<1x128xf32, #tpu.memory_space<vmem>>) target_semaphore(%arg8 : memref<!tpu.dma_semaphore, #tpu.memory_space<semaphore_mem>>)
    }
    %c128_i32_1 = arith.constant 128 : i32
    %c0_i32_2 = arith.constant 0 : i32
    %c128_i32_3 = arith.constant 128 : i32
    %2 = arith.addi %c0_i32_2, %c128_i32_3 : i32
    %c1_i32_4 = arith.constant 1 : i32
    scf.for %arg9 = %c0_i32_2 to %2 step %c1_i32_4  : i32 {
      %c0_i32_18 = arith.constant 0 : i32
      %c0_i32_19 = arith.constant 0 : i32
      %28 = tpu.memref_slice %arg5[%c0_i32_18, %c0_i32_19] : memref<64x128xf32, #tpu.memory_space<any>> -> memref<1x128xf32, #tpu.memory_space<any>>
      %c0_i32_20 = arith.constant 0 : i32
      %29 = tpu.memref_slice %arg7[%arg9, %c0_i32_20] : memref<128x128xf32, #tpu.memory_space<vmem>> -> memref<1x128xf32, #tpu.memory_space<vmem>>
      tpu.wait_dma2 semaphore(%arg8 : memref<!tpu.dma_semaphore, #tpu.memory_space<semaphore_mem>>) src(%28 : memref<1x128xf32, #tpu.memory_space<any>>) dst(%29 : memref<1x128xf32, #tpu.memory_space<vmem>>)
    }
    %c128_i32_5 = arith.constant 128 : i32
    %c0 = arith.constant 0 : index
    %c0_6 = arith.constant 0 : index
    %3 = vector.load %arg2[%c0, %c0_6] : memref<128x1xi32, #tpu.memory_space<vmem>>, vector<128x1xi32>
    %c0_7 = arith.constant 0 : index
    %c0_8 = arith.constant 0 : index
    %4 = vector.load %arg4[%c0_7, %c0_8] : memref<8x128xf32, #tpu.memory_space<vmem>>, vector<1x128xf32>
    %c1 = arith.constant 1 : index
    %c0_9 = arith.constant 0 : index
    %5 = vector.load %arg4[%c1, %c0_9] : memref<8x128xf32, #tpu.memory_space<vmem>>, vector<1x128xf32>
    %c2 = arith.constant 2 : index
    %c0_10 = arith.constant 0 : index
    %6 = vector.load %arg4[%c2, %c0_10] : memref<8x128xf32, #tpu.memory_space<vmem>>, vector<1x128xf32>
    %c1_i32_11 = arith.constant 1 : i32
    %7 = vector.broadcast %c1_i32_11 : i32 to vector<128x1xi32>
    %8 = arith.cmpi eq, %3, %7 : vector<128x1xi32>
    %c2_i32 = arith.constant 2 : i32
    %9 = vector.broadcast %c2_i32 : i32 to vector<128x1xi32>
    %10 = arith.cmpi eq, %3, %9 : vector<128x1xi32>
    %11 = vector.shape_cast %10 : vector<128x1xi1> to vector<128x1xi1>
    %12 = vector.broadcast %11 : vector<128x1xi1> to vector<128x128xi1>
    %13 = vector.shape_cast %6 : vector<1x128xf32> to vector<1x128xf32>
    %14 = vector.broadcast %13 : vector<1x128xf32> to vector<128x128xf32>
    %15 = vector.shape_cast %4 : vector<1x128xf32> to vector<1x128xf32>
    %16 = vector.broadcast %15 : vector<1x128xf32> to vector<128x128xf32>
    %17 = arith.select %12, %14, %16 : vector<128x128xi1>, vector<128x128xf32>
    %18 = vector.shape_cast %8 : vector<128x1xi1> to vector<128x1xi1>
    %19 = vector.broadcast %18 : vector<128x1xi1> to vector<128x128xi1>
    %20 = vector.shape_cast %5 : vector<1x128xf32> to vector<1x128xf32>
    %21 = vector.broadcast %20 : vector<1x128xf32> to vector<128x128xf32>
    %22 = arith.select %19, %21, %17 : vector<128x128xi1>, vector<128x128xf32>
    %c0_12 = arith.constant 0 : index
    %c0_13 = arith.constant 0 : index
    %23 = vector.load %arg7[%c0_12, %c0_13] : memref<128x128xf32, #tpu.memory_space<vmem>>, vector<128x128xf32>
    %24 = arith.addf %23, %22 : vector<128x128xf32>
    %c0_14 = arith.constant 0 : index
    %c0_15 = arith.constant 0 : index
    %25 = vector.load %arg3[%c0_14, %c0_15] : memref<128x128xf32, #tpu.memory_space<vmem>>, vector<128x128xf32>
    %26 = arith.addf %24, %25 : vector<128x128xf32>
    %c0_16 = arith.constant 0 : index
    %c0_17 = arith.constant 0 : index
    %27 = vector.load %arg6[%c0_16, %c0_17] : memref<128x128xf32, #tpu.memory_space<vmem>>, vector<128x128xf32>
    tpu.vector_store %arg6[%c0_16, %c0_17], %26 {strides = array<i32>} : memref<128x128xf32, #tpu.memory_space<vmem>>, vector<128x128xf32>,
    return
  }
  func.func @transform_0(%arg0: i32, %arg1: memref<128xi32, #tpu.memory_space<smem>>) -> (i32, i32) {
    %c0_i32 = arith.constant 0 : i32
    %c0_i32_0 = arith.constant 0 : i32
    return %arg0, %c0_i32 : i32, i32
  }
  func.func @transform_1(%arg0: i32, %arg1: memref<128xi32, #tpu.memory_space<smem>>) -> (i32, i32) {
    %c0_i32 = arith.constant 0 : i32
    %c0_i32_0 = arith.constant 0 : i32
    return %arg0, %c0_i32 : i32, i32
  }
  func.func @transform_2(%arg0: i32, %arg1: memref<128xi32, #tpu.memory_space<smem>>) -> (i32, i32) {
    %c0_i32 = arith.constant 0 : i32
    %c0_i32_0 = arith.constant 0 : i32
    %c0_i32_1 = arith.constant 0 : i32
    return %c0_i32, %c0_i32_0 : i32, i32
  }
  func.func @transform_4(%arg0: i32, %arg1: memref<128xi32, #tpu.memory_space<smem>>) -> (i32, i32) {
    %c0_i32 = arith.constant 0 : i32
    %c0_i32_0 = arith.constant 0 : i32
    return %arg0, %c0_i32 : i32, i32
  }
}

</mosaic_0001>

<llo_original>
// kernel: tpu_custom_call.1
$region0: #{tpu_custom_call.1}
  #allocation0 [shape = 'u32[]', space=smem, size = 0x4, offset = 0x4, fixed_abs, tag = 'smem constant byte address 0x4 - core index']
  #allocation1 [shape = 'u32[72,128]{1,0:T(1,128)}', space=vmem, size = 0x9000, scoped, tag = 'internal scratch']
  #allocation2 [shape = 'f32[128,128]{1,0:T(8,128)}', space=vmem, size = 0x10000, scoped, tag = 'scratch operand']
  #allocation3 [shape = 's32[1]{0}', space=sflag, size = 0x4, scoped, tag = 'scratch operand']
  #allocation4 [shape = 's32[1]{0}', space=sflag, size = 0x4, scoped, tag = 'scoped memory for tpu_custom_call.1']
  #allocation5 [shape = 'u8[512]{0}', space=smem, size = 0x200, scoped, tag = 'prefetched SMEM operand 0']
  #allocation10 [shape = 's32[]', space=sflag, size = 0x4, offset = 0, fixed_abs, tag = 'sflag constant byte address 0x0 - dummy sync flag']
  #allocation11 [shape = 's32[]', space=sflag, size = 0x4, offset = 0, fixed_abs, tag = 'sflag constant byte address 0x0 - dummy sync flag']
  #allocation12 [shape = 'u32[]', space=smem, size = 0x4, offset = 0x44, fixed_abs, tag = 'smem constant byte address 0x44 - assertion arg 0']
  #allocation13 [shape = 'u32[]', space=smem, size = 0x4, offset = 0x48, fixed_abs, tag = 'smem constant byte address 0x48 - assertion arg 1']
  %s0 = inlined_call_operand.vmem [shape: s32[128], index: 0, kind: input, shape index: {}]
  %s1 = inlined_call_operand.vmem [shape: s32[128,1], index: 1, kind: input, shape index: {}]
  %s2 = inlined_call_operand.vmem [shape: f32[128,128], index: 2, kind: input, shape index: {}]
  %s3 = inlined_call_operand.hbm [shape: f32[8,128], index: 3, kind: input, shape index: {}]
  %s4 = inlined_call_operand.hbm [shape: f32[64,128], index: 4, kind: input, shape index: {}]
  %s5 = inlined_call_operand.hbm [shape: f32[128,128], index: 5, kind: output, shape index: {}]
  %s6 = sld [smem:[#allocation0]]
  $region44: #{tpu_custom_call.1} parent=0
    _
  %s8 = ssub.s32 1, %s6
  %s9 = scalar_select 0, %s8, %s6
  %s11 = sshll.u32 %s0, 4
  %s12 = int_to_ptr.vmem [resolvable:$true] %s11
  %14 = dma.vmem_to_smem %s12, 16, [#allocation5], [#allocation4]
  %16 = dma.done [#allocation4], 16
  %17 = sfence
  $region1: #{tpu_custom_call.1} parent=0
    #allocation6 [shape = 'u8[4096]{0}', space=vmem, size = 0x1000, scoped, tag = 'input window, operand 3, single buffered']
    #allocation7 [shape = 's32[1]{0}', space=sflag, size = 0x4, scoped, tag = 'scoped memory for tpu_custom_call.1']
    #allocation8 [shape = 's32[1]{0}', space=sflag, size = 0x4, scoped, tag = 'scoped memory for tpu_custom_call.1']
    #allocation9 [shape = 'u8[65536]{0}', space=vmem, size = 0x10000, scoped, tag = 'output window, operand 0, single buffered']
    %18 = vsyncpa [#allocation7], 0
    %19 = vsyncpa [#allocation8], 0
    // Predicated region
    $region2: #{tpu_custom_call.1} parent=1 // pred_check
      _
    $region3: #{tpu_custom_call.1} parent=1 // pred_check_branch
      %21 = sbr.rel (0) target = $region5
    $region4: #{tpu_custom_call.1} parent=1 // pred_region
      _
    $region5: #{tpu_custom_call.1} parent=1 // pred_fallthru
      _
    // Predicated region
    $region6: #{tpu_custom_call.1} parent=1 // pred_check
      _
    $region7: #{tpu_custom_call.1} parent=1 // pred_check_branch
      %23 = sbr.rel (0) target = $region9
    $region8: #{tpu_custom_call.1} parent=1 // pred_region
      _
    $region9: #{tpu_custom_call.1} parent=1 // pred_fallthru
      _
    // Predicated region
    $region10: #{tpu_custom_call.1} parent=1 // pred_check
      _
    $region11: #{tpu_custom_call.1} parent=1 // pred_check_branch
      %25 = sbr.rel (0) target = $region13
    $region12: #{tpu_custom_call.1} parent=1 // pred_region
      %27 = vsyncadd [#allocation7], 0
      %s29 = sshll.u32 %s3, 4
      %s30 = int_to_ptr.hbm [resolvable:$true] %s29
      %s31 = sshll.u32 [#allocation6], 4
      %s32 = int_to_ptr.vmem [resolvable:$true] %s31
      %34 = dma.hbm_to_vmem [thread:$0]  %s30, 128, %s32, [#allocation7]
    $region13: #{tpu_custom_call.1} parent=1 // pred_fallthru
      _
    // Predicated region
    $region14: #{tpu_custom_call.1} parent=1 // pred_check
      _
    $region15: #{tpu_custom_call.1} parent=1 // pred_check_branch
      %36 = sbr.rel (0) target = $region17
    $region16: #{tpu_custom_call.1} parent=1 // pred_region
      %38 = dma.done [#allocation7], 128
    $region17: #{tpu_custom_call.1} parent=1 // pred_fallthru
      _
    %s39 = smul.u32 0, 128
    loop: start=0, step=1, limit=128
    $region18: #{tpu_custom_call.1} parent=1 // loop_pre_header
      _
    $region19: #{tpu_custom_call.1} parent=1 // loop_header
      %s41 = sphi 0, %s45
      %p42 = scmp.ge.s32.totalorder %s41, 128
    $region20: #{tpu_custom_call.1} parent=1 // loop_header_branch
      %44 = sbr.rel (%p42) target = $region24
    $region21: #{tpu_custom_call.1} parent=1 // loop_body
      %s46 = sadd.s32 %s39, %s41
      %s47 = sld [smem:[#allocation5 + %s46]]
      %s48 = scalar_lea.hbm %s4, %s47
      %s49 = scalar_lea.vmem [#allocation2], %s41
      // Predicated region
      $region25: #{tpu_custom_call.1} parent=21 // pred_check
        _
      $region26: #{tpu_custom_call.1} parent=21 // pred_check_branch
        %51 = sbr.rel target = $region28
      $region27: #{tpu_custom_call.1} parent=21 // pred_region
        %52 = sst [smem:[#allocation12]] [#allocation11]
        %53 = sst [smem:[#allocation13]] [#allocation10]
      $region28: #{tpu_custom_call.1} parent=21 // pred_fallthru
        _
      %55 = shalt.err (0)
      %s57 = sshll.u32 %s48, 4
      %s58 = int_to_ptr.hbm [resolvable:$true] %s57
      %s59 = sshll.u32 %s49, 4
      %s60 = int_to_ptr.vmem [resolvable:$true] %s59
      %62 = dma.hbm_to_vmem [thread:$0]  %s58, 16, %s60, [#allocation3]
    $region22: #{tpu_custom_call.1} parent=1 // loop_footer
      %s45 = sadd.s32 1, %s41
    $region23: #{tpu_custom_call.1} parent=1 // loop_footer_branch
      %40 = sbr.rel target = $region19
    $region24: #{tpu_custom_call.1} parent=1 // loop_exit
      _
    loop: start=0, step=1, limit=128
    $region29: #{tpu_custom_call.1} parent=1 // loop_pre_header
      _
    $region30: #{tpu_custom_call.1} parent=1 // loop_header
      %s64 = sphi 0, %s68
      %p65 = scmp.ge.s32.totalorder %s64, 128
    $region31: #{tpu_custom_call.1} parent=1 // loop_header_branch
      %67 = sbr.rel (%p65) target = $region35
    $region32: #{tpu_custom_call.1} parent=1 // loop_body
      %s69 = smul.u32 1, 1
      %s70 = sshll.u32 %s69, 4
      %71 = dma.done [#allocation3], %s70
    $region33: #{tpu_custom_call.1} parent=1 // loop_footer
      %s68 = sadd.s32 1, %s64
    $region34: #{tpu_custom_call.1} parent=1 // loop_footer_branch
      %63 = sbr.rel target = $region30
    $region35: #{tpu_custom_call.1} parent=1 // loop_exit
      _
    %v72 = vld [vmem:[%s1] sm:$0xff]
    %v73 = vld [vmem:[%s1 + $0x8] sm:$0xff]
    %v74 = vld [vmem:[%s1 + $0x10] sm:$0xff]
    %v75 = vld [vmem:[%s1 + $0x18] sm:$0xff]
    %v76 = vld [vmem:[%s1 + $0x20] sm:$0xff]
    %v77 = vld [vmem:[%s1 + $0x28] sm:$0xff]
    %v78 = vld [vmem:[%s1 + $0x30] sm:$0xff]
    %v79 = vld [vmem:[%s1 + $0x38] sm:$0xff]
    %v80 = vld [vmem:[%s1 + $0x40] sm:$0xff]
    %v81 = vld [vmem:[%s1 + $0x48] sm:$0xff]
    %v82 = vld [vmem:[%s1 + $0x50] sm:$0xff]
    %v83 = vld [vmem:[%s1 + $0x58] sm:$0xff]
    %v84 = vld [vmem:[%s1 + $0x60] sm:$0xff]
    %v85 = vld [vmem:[%s1 + $0x68] sm:$0xff]
    %v86 = vld [vmem:[%s1 + $0x70] sm:$0xff]
    %v87 = vld [vmem:[%s1 + $0x78] sm:$0xff]
    %v88 = vld [vmem:[#allocation6] sm:$0x1]
    %v89 = vld [vmem:[#allocation6 + $0x1] sm:$0x1]
    %v90 = vld [vmem:[#allocation6 + $0x2] sm:$0x1]
    %vm91 = vcmp.eq.s32.totalorder %v72, 1
    %vm92 = vcmp.eq.s32.totalorder %v73, 1
    %vm93 = vcmp.eq.s32.totalorder %v74, 1
    %vm94 = vcmp.eq.s32.totalorder %v75, 1
    %vm95 = vcmp.eq.s32.totalorder %v76, 1
    %vm96 = vcmp.eq.s32.totalorder %v77, 1
    %vm97 = vcmp.eq.s32.totalorder %v78, 1
    %vm98 = vcmp.eq.s32.totalorder %v79, 1
    %vm99 = vcmp.eq.s32.totalorder %v80, 1
    %vm100 = vcmp.eq.s32.totalorder %v81, 1
    %vm101 = vcmp.eq.s32.totalorder %v82, 1
    %vm102 = vcmp.eq.s32.totalorder %v83, 1
    %vm103 = vcmp.eq.s32.totalorder %v84, 1
    %vm104 = vcmp.eq.s32.totalorder %v85, 1
    %vm105 = vcmp.eq.s32.totalorder %v86, 1
    %vm106 = vcmp.eq.s32.totalorder %v87, 1
    %vm107 = vcmp.eq.s32.totalorder %v72, 2
    %vm108 = vcmp.eq.s32.totalorder %v73, 2
    %vm109 = vcmp.eq.s32.totalorder %v74, 2
    %vm110 = vcmp.eq.s32.totalorder %v75, 2
    %vm111 = vcmp.eq.s32.totalorder %v76, 2
    %vm112 = vcmp.eq.s32.totalorder %v77, 2
    %vm113 = vcmp.eq.s32.totalorder %v78, 2
    %vm114 = vcmp.eq.s32.totalorder %v79, 2
    %vm115 = vcmp.eq.s32.totalorder %v80, 2
    %vm116 = vcmp.eq.s32.totalorder %v81, 2
    %vm117 = vcmp.eq.s32.totalorder %v82, 2
    %vm118 = vcmp.eq.s32.totalorder %v83, 2
    %vm119 = vcmp.eq.s32.totalorder %v84, 2
    %vm120 = vcmp.eq.s32.totalorder %v85, 2
    %vm121 = vcmp.eq.s32.totalorder %v86, 2
    %vm122 = vcmp.eq.s32.totalorder %v87, 2
    %v123 = vsel %vm107, 1, 0
    %v124 = vsel %vm108, 1, 0
    %v125 = vsel %vm109, 1, 0
    %v126 = vsel %vm110, 1, 0
    %v127 = vsel %vm111, 1, 0
    %v128 = vsel %vm112, 1, 0
    %v129 = vsel %vm113, 1, 0
    %v130 = vsel %vm114, 1, 0
    %v131 = vsel %vm115, 1, 0
    %v132 = vsel %vm116, 1, 0
    %v133 = vsel %vm117, 1, 0
    %v134 = vsel %vm118, 1, 0
    %v135 = vsel %vm119, 1, 0
    %v136 = vsel %vm120, 1, 0
    %v137 = vsel %vm121, 1, 0
    %v138 = vsel %vm122, 1, 0
    %139 = vset.pattern.permute.xlu0 0
    %140 = vperm.xlu0 %139, %v123
    %v141 = vpop.permute.xlu0 %140
    %142 = vset.pattern.permute.xlu0 0
    %143 = vperm.xlu0 %142, %v124
    %v144 = vpop.permute.xlu0 %143
    %145 = vset.pattern.permute.xlu0 0
    %146 = vperm.xlu0 %145, %v125
    %v147 = vpop.permute.xlu0 %146
    %148 = vset.pattern.permute.xlu0 0
    %149 = vperm.xlu0 %148, %v126
    %v150 = vpop.permute.xlu0 %149
    %151 = vset.pattern.permute.xlu0 0
    %152 = vperm.xlu0 %151, %v127
    %v153 = vpop.permute.xlu0 %152
    %154 = vset.pattern.permute.xlu0 0
    %155 = vperm.xlu0 %154, %v128
    %v156 = vpop.permute.xlu0 %155
    %157 = vset.pattern.permute.xlu0 0
    %158 = vperm.xlu0 %157, %v129
    %v159 = vpop.permute.xlu0 %158
    %160 = vset.pattern.permute.xlu0 0
    %161 = vperm.xlu0 %160, %v130
    %v162 = vpop.permute.xlu0 %161
    %163 = vset.pattern.permute.xlu0 0
    %164 = vperm.xlu0 %163, %v131
    %v165 = vpop.permute.xlu0 %164
    %166 = vset.pattern.permute.xlu0 0
    %167 = vperm.xlu0 %166, %v132
    %v168 = vpop.permute.xlu0 %167
    %169 = vset.pattern.permute.xlu0 0
    %170 = vperm.xlu0 %169, %v133
    %v171 = vpop.permute.xlu0 %170
    %172 = vset.pattern.permute.xlu0 0
    %173 = vperm.xlu0 %172, %v134
    %v174 = vpop.permute.xlu0 %173
    %175 = vset.pattern.permute.xlu0 0
    %176 = vperm.xlu0 %175, %v135
    %v177 = vpop.permute.xlu0 %176
    %178 = vset.pattern.permute.xlu0 0
    %179 = vperm.xlu0 %178, %v136
    %v180 = vpop.permute.xlu0 %179
    %181 = vset.pattern.permute.xlu0 0
    %182 = vperm.xlu0 %181, %v137
    %v183 = vpop.permute.xlu0 %182
    %184 = vset.pattern.permute.xlu0 0
    %185 = vperm.xlu0 %184, %v138
    %v186 = vpop.permute.xlu0 %185
    %vm187 = vcmp.eq.s32.totalorder %v141, 1
    %vm188 = vcmp.eq.s32.totalorder %v144, 1
    %vm189 = vcmp.eq.s32.totalorder %v147, 1
    %vm190 = vcmp.eq.s32.totalorder %v150, 1
    %vm191 = vcmp.eq.s32.totalorder %v153, 1
    %vm192 = vcmp.eq.s32.totalorder %v156, 1
    %vm193 = vcmp.eq.s32.totalorder %v159, 1
    %vm194 = vcmp.eq.s32.totalorder %v162, 1
    %vm195 = vcmp.eq.s32.totalorder %v165, 1
    %vm196 = vcmp.eq.s32.totalorder %v168, 1
    %vm197 = vcmp.eq.s32.totalorder %v171, 1
    %vm198 = vcmp.eq.s32.totalorder %v174, 1
    %vm199 = vcmp.eq.s32.totalorder %v177, 1
    %vm200 = vcmp.eq.s32.totalorder %v180, 1
    %vm201 = vcmp.eq.s32.totalorder %v183, 1
    %vm202 = vcmp.eq.s32.totalorder %v186, 1
    %v203 = vperm.slane %v90, 0
    %v204 = vperm.slane %v88, 0
    %v205 = vsel %vm187, %v203, %v204
    %v206 = vsel %vm188, %v203, %v204
    %v207 = vsel %vm189, %v203, %v204
    %v208 = vsel %vm190, %v203, %v204
    %v209 = vsel %vm191, %v203, %v204
    %v210 = vsel %vm192, %v203, %v204
    %v211 = vsel %vm193, %v203, %v204
    %v212 = vsel %vm194, %v203, %v204
    %v213 = vsel %vm195, %v203, %v204
    %v214 = vsel %vm196, %v203, %v204
    %v215 = vsel %vm197, %v203, %v204
    %v216 = vsel %vm198, %v203, %v204
    %v217 = vsel %vm199, %v203, %v204
    %v218 = vsel %vm200, %v203, %v204
    %v219 = vsel %vm201, %v203, %v204
    %v220 = vsel %vm202, %v203, %v204
    %v221 = vsel %vm91, 1, 0
    %v222 = vsel %vm92, 1, 0
    %v223 = vsel %vm93, 1, 0
    %v224 = vsel %vm94, 1, 0
    %v225 = vsel %vm95, 1, 0
    %v226 = vsel %vm96, 1, 0
    %v227 = vsel %vm97, 1, 0
    %v228 = vsel %vm98, 1, 0
    %v229 = vsel %vm99, 1, 0
    %v230 = vsel %vm100, 1, 0
    %v231 = vsel %vm101, 1, 0
    %v232 = vsel %vm102, 1, 0
    %v233 = vsel %vm103, 1, 0
    %v234 = vsel %vm104, 1, 0
    %v235 = vsel %vm105, 1, 0
    %v236 = vsel %vm106, 1, 0
    %237 = vset.pattern.permute.xlu0 0
    %238 = vperm.xlu0 %237, %v221
    %v239 = vpop.permute.xlu0 %238
    %240 = vset.pattern.permute.xlu0 0
    %241 = vperm.xlu0 %240, %v222
    %v242 = vpop.permute.xlu0 %241
    %243 = vset.pattern.permute.xlu0 0
    %244 = vperm.xlu0 %243, %v223
    %v245 = vpop.permute.xlu0 %244
    %246 = vset.pattern.permute.xlu0 0
    %247 = vperm.xlu0 %246, %v224
    %v248 = vpop.permute.xlu0 %247
    %249 = vset.pattern.permute.xlu0 0
    %250 = vperm.xlu0 %249, %v225
    %v251 = vpop.permute.xlu0 %250
    %252 = vset.pattern.permute.xlu0 0
    %253 = vperm.xlu0 %252, %v226
    %v254 = vpop.permute.xlu0 %253
    %255 = vset.pattern.permute.xlu0 0
    %256 = vperm.xlu0 %255, %v227
    %v257 = vpop.permute.xlu0 %256
    %258 = vset.pattern.permute.xlu0 0
    %259 = vperm.xlu0 %258, %v228
    %v260 = vpop.permute.xlu0 %259
    %261 = vset.pattern.permute.xlu0 0
    %262 = vperm.xlu0 %261, %v229
    %v263 = vpop.permute.xlu0 %262
    %264 = vset.pattern.permute.xlu0 0
    %265 = vperm.xlu0 %264, %v230
    %v266 = vpop.permute.xlu0 %265
    %267 = vset.pattern.permute.xlu0 0
    %268 = vperm.xlu0 %267, %v231
    %v269 = vpop.permute.xlu0 %268
    %270 = vset.pattern.permute.xlu0 0
    %271 = vperm.xlu0 %270, %v232
    %v272 = vpop.permute.xlu0 %271
    %273 = vset.pattern.permute.xlu0 0
    %274 = vperm.xlu0 %273, %v233
    %v275 = vpop.permute.xlu0 %274
    %276 = vset.pattern.permute.xlu0 0
    %277 = vperm.xlu0 %276, %v234
    %v278 = vpop.permute.xlu0 %277
    %279 = vset.pattern.permute.xlu0 0
    %280 = vperm.xlu0 %279, %v235
    %v281 = vpop.permute.xlu0 %280
    %282 = vset.pattern.permute.xlu0 0
    %283 = vperm.xlu0 %282, %v236
    %v284 = vpop.permute.xlu0 %283
    %vm285 = vcmp.eq.s32.totalorder %v239, 1
    %vm286 = vcmp.eq.s32.totalorder %v242, 1
    %vm287 = vcmp.eq.s32.totalorder %v245, 1
    %vm288 = vcmp.eq.s32.totalorder %v248, 1
    %vm289 = vcmp.eq.s32.totalorder %v251, 1
    %vm290 = vcmp.eq.s32.totalorder %v254, 1
    %vm291 = vcmp.eq.s32.totalorder %v257, 1
    %vm292 = vcmp.eq.s32.totalorder %v260, 1
    %vm293 = vcmp.eq.s32.totalorder %v263, 1
    %vm294 = vcmp.eq.s32.totalorder %v266, 1
    %vm295 = vcmp.eq.s32.totalorder %v269, 1
    %vm296 = vcmp.eq.s32.totalorder %v272, 1
    %vm297 = vcmp.eq.s32.totalorder %v275, 1
    %vm298 = vcmp.eq.s32.totalorder %v278, 1
    %vm299 = vcmp.eq.s32.totalorder %v281, 1
    %vm300 = vcmp.eq.s32.totalorder %v284, 1
    %v301 = vperm.slane %v89, 0
    %v302 = vsel %vm285, %v301, %v205
    %v303 = vsel %vm286, %v301, %v206
    %v304 = vsel %vm287, %v301, %v207
    %v305 = vsel %vm288, %v301, %v208
    %v306 = vsel %vm289, %v301, %v209
    %v307 = vsel %vm290, %v301, %v210
    %v308 = vsel %vm291, %v301, %v211
    %v309 = vsel %vm292, %v301, %v212
    %v310 = vsel %vm293, %v301, %v213
    %v311 = vsel %vm294, %v301, %v214
    %v312 = vsel %vm295, %v301, %v215
    %v313 = vsel %vm296, %v301, %v216
    %v314 = vsel %vm297, %v301, %v217
    %v315 = vsel %vm298, %v301, %v218
    %v316 = vsel %vm299, %v301, %v219
    %v317 = vsel %vm300, %v301, %v220
    %v318 = vld [vmem:[#allocation2] sm:$0xff]
    %v319 = vld [vmem:[#allocation2 + $0x8] sm:$0xff]
    %v320 = vld [vmem:[#allocation2 + $0x10] sm:$0xff]
    %v321 = vld [vmem:[#allocation2 + $0x18] sm:$0xff]
    %v322 = vld [vmem:[#allocation2 + $0x20] sm:$0xff]
    %v323 = vld [vmem:[#allocation2 + $0x28] sm:$0xff]
    %v324 = vld [vmem:[#allocation2 + $0x30] sm:$0xff]
    %v325 = vld [vmem:[#allocation2 + $0x38] sm:$0xff]
    %v326 = vld [vmem:[#allocation2 + $0x40] sm:$0xff]
    %v327 = vld [vmem:[#allocation2 + $0x48] sm:$0xff]
    %v328 = vld [vmem:[#allocation2 + $0x50] sm:$0xff]
    %v329 = vld [vmem:[#allocation2 + $0x58] sm:$0xff]
    %v330 = vld [vmem:[#allocation2 + $0x60] sm:$0xff]
    %v331 = vld [vmem:[#allocation2 + $0x68] sm:$0xff]
    %v332 = vld [vmem:[#allocation2 + $0x70] sm:$0xff]
    %v333 = vld [vmem:[#allocation2 + $0x78] sm:$0xff]
    %v334 = vadd.f32 %v318, %v302
    %v335 = vadd.f32 %v319, %v303
    %v336 = vadd.f32 %v320, %v304
    %v337 = vadd.f32 %v321, %v305
    %v338 = vadd.f32 %v322, %v306
    %v339 = vadd.f32 %v323, %v307
    %v340 = vadd.f32 %v324, %v308
    %v341 = vadd.f32 %v325, %v309
    %v342 = vadd.f32 %v326, %v310
    %v343 = vadd.f32 %v327, %v311
    %v344 = vadd.f32 %v328, %v312
    %v345 = vadd.f32 %v329, %v313
    %v346 = vadd.f32 %v330, %v314
    %v347 = vadd.f32 %v331, %v315
    %v348 = vadd.f32 %v332, %v316
    %v349 = vadd.f32 %v333, %v317
    %v350 = vld [vmem:[%s2] sm:$0xff]
    %v351 = vld [vmem:[%s2 + $0x8] sm:$0xff]
    %v352 = vld [vmem:[%s2 + $0x10] sm:$0xff]
    %v353 = vld [vmem:[%s2 + $0x18] sm:$0xff]
    %v354 = vld [vmem:[%s2 + $0x20] sm:$0xff]
    %v355 = vld [vmem:[%s2 + $0x28] sm:$0xff]
    %v356 = vld [vmem:[%s2 + $0x30] sm:$0xff]
    %v357 = vld [vmem:[%s2 + $0x38] sm:$0xff]
    %v358 = vld [vmem:[%s2 + $0x40] sm:$0xff]
    %v359 = vld [vmem:[%s2 + $0x48] sm:$0xff]
    %v360 = vld [vmem:[%s2 + $0x50] sm:$0xff]
    %v361 = vld [vmem:[%s2 + $0x58] sm:$0xff]
    %v362 = vld [vmem:[%s2 + $0x60] sm:$0xff]
    %v363 = vld [vmem:[%s2 + $0x68] sm:$0xff]
    %v364 = vld [vmem:[%s2 + $0x70] sm:$0xff]
    %v365 = vld [vmem:[%s2 + $0x78] sm:$0xff]
    %v366 = vadd.f32 %v334, %v350
    %v367 = vadd.f32 %v335, %v351
    %v368 = vadd.f32 %v336, %v352
    %v369 = vadd.f32 %v337, %v353
    %v370 = vadd.f32 %v338, %v354
    %v371 = vadd.f32 %v339, %v355
    %v372 = vadd.f32 %v340, %v356
    %v373 = vadd.f32 %v341, %v357
    %v374 = vadd.f32 %v342, %v358
    %v375 = vadd.f32 %v343, %v359
    %v376 = vadd.f32 %v344, %v360
    %v377 = vadd.f32 %v345, %v361
    %v378 = vadd.f32 %v346, %v362
    %v379 = vadd.f32 %v347, %v363
    %v380 = vadd.f32 %v348, %v364
    %v381 = vadd.f32 %v349, %v365
    %382 = vst [vmem:[#allocation9] sm:$0xff] %v366
    %383 = vst [vmem:[#allocation9 + $0x8] sm:$0xff] %v367
    %384 = vst [vmem:[#allocation9 + $0x10] sm:$0xff] %v368
    %385 = vst [vmem:[#allocation9 + $0x18] sm:$0xff] %v369
    %386 = vst [vmem:[#allocation9 + $0x20] sm:$0xff] %v370
    %387 = vst [vmem:[#allocation9 + $0x28] sm:$0xff] %v371
    %388 = vst [vmem:[#allocation9 + $0x30] sm:$0xff] %v372
    %389 = vst [vmem:[#allocation9 + $0x38] sm:$0xff] %v373
    %390 = vst [vmem:[#allocation9 + $0x40] sm:$0xff] %v374
    %391 = vst [vmem:[#allocation9 + $0x48] sm:$0xff] %v375
    %392 = vst [vmem:[#allocation9 + $0x50] sm:$0xff] %v376
    %393 = vst [vmem:[#allocation9 + $0x58] sm:$0xff] %v377
    %394 = vst [vmem:[#allocation9 + $0x60] sm:$0xff] %v378
    %395 = vst [vmem:[#allocation9 + $0x68] sm:$0xff] %v379
    %396 = vst [vmem:[#allocation9 + $0x70] sm:$0xff] %v380
    %397 = vst [vmem:[#allocation9 + $0x78] sm:$0xff] %v381
    // Predicated region
    $region36: #{tpu_custom_call.1} parent=1 // pred_check
      _
    $region37: #{tpu_custom_call.1} parent=1 // pred_check_branch
      %399 = sbr.rel (0) target = $region39
    $region38: #{tpu_custom_call.1} parent=1 // pred_region
      %401 = vsyncadd [#allocation8], 0
      %s402 = sshll.u32 [#allocation9], 4
      %s403 = int_to_ptr.vmem [resolvable:$true] %s402
      %s404 = sshll.u32 %s5, 4
      %s405 = int_to_ptr.hbm [resolvable:$true] %s404
      %410 = dma.vmem_to_hbm [thread:$0]  %s403, 2048, %s405, [#allocation8], 128, 128, 8
    $region39: #{tpu_custom_call.1} parent=1 // pred_fallthru
      _
    // Predicated region
    $region40: #{tpu_custom_call.1} parent=1 // pred_check
      _
    $region41: #{tpu_custom_call.1} parent=1 // pred_check_branch
      %412 = sbr.rel (0) target = $region43
    $region42: #{tpu_custom_call.1} parent=1 // pred_region
      %414 = dma.done [#allocation8], 2048
    $region43: #{tpu_custom_call.1} parent=1 // pred_fallthru
      _
    %415 = vsyncpa [#allocation7], 1
    %416 = vsyncpa [#allocation8], 1
  %417 = vsyncmov [#allocation3]
  %s418 = vpop.sfrf %417
  %p419 = scmp.eq.s32.totalorder %s418, 0
  %p420 = pneg %p419
  %422 = shalt.err (%p420)

</llo_original>
